<compile_context>
chip_gen: v5e
topology: v5e:2x2
jax: 0.10.0
libtpu: 0.0.40
codegen_flags: <defaults>
</compile_context>

<pallas_src>
import functools

import jax
import jax.numpy as jnp
from jax.experimental import pallas as pl
from jax.experimental.pallas import tpu as pltpu


def _discriminator_kernel(
    x_ref,
    w_in_ref, b_in_ref,
    w_h1_ref, b_h1_ref,
    w_h2_ref, b_h2_ref,
    w_out_ref, b_out_ref,
    w_sfc_ref, b_sfc_ref,
    o_ref,
):
    # x tile arrives as [TB, F]. Cast to bf16 first (halves the vregs the XLU
    # transpose has to move and is the native MXU input dtype), then flip it
    # once so the batch sits on the lane axis for the rest of the kernel.
    x_bf = x_ref[...].astype(jnp.bfloat16)                       # [TB, F] bf16
    xT = jnp.transpose(x_bf, (1, 0))                             # [F, TB] bf16

    # Hidden stack: h = tanh(W @ h + b). W is PyTorch-layout [out, in] bf16;
    # biases are f32 [out, 1] columns broadcasting over the lane (batch) axis.
    # bf16 operands + f32 accumulation = fast MXU path on every generation.
    h = jnp.dot(w_in_ref[...], xT, preferred_element_type=jnp.float32) + b_in_ref[...]
    h = jnp.tanh(h)                                              # f32 (v5e-safe)
    h = jnp.dot(w_h1_ref[...], h.astype(jnp.bfloat16),
                preferred_element_type=jnp.float32) + b_h1_ref[...]
    h = jnp.tanh(h)
    h = jnp.dot(w_h2_ref[...], h.astype(jnp.bfloat16),
                preferred_element_type=jnp.float32) + b_h2_ref[...]
    h = jnp.tanh(h)                                              # [H, TB] f32

    # N=1 heads on VPU/XLU instead of the MXU: elementwise multiply by the
    # f32 [*, 1] weight column, reduce over the feature (sublane) axis.
    out_row = jnp.sum(h * w_out_ref[...], axis=0, keepdims=True) + b_out_ref[...]       # [1, TB]
    skip_row = (jnp.sum(xT.astype(jnp.float32) * w_sfc_ref[...], axis=0, keepdims=True)
                + b_sfc_ref[...])                                                        # [1, TB]

    o_ref[...] = (out_row + jnp.maximum(skip_row, 0.0)).astype(o_ref.dtype)


def _round_up(n, m):
    return ((n + m - 1) // m) * m


def _xla_forward(x, p):
    """Plain fused-XLA forward used as the small-batch (B < 128) fast path."""
    h = jnp.tanh(x @ p["w_in"].T + p["b_in"].T)
    h = jnp.tanh(h @ p["w_h1"].T + p["b_h1"].T)
    h = jnp.tanh(h @ p["w_h2"].T + p["b_h2"].T)
    out = h @ p["w_out"] + p["b_out"].T
    skip = jnp.maximum(x @ p["w_sfc"] + p["b_sfc"].T, 0.0)
    return out + skip


@functools.partial(jax.jit, static_argnames=("block_b",))
def discriminator_forward(x, params, block_b=None):
    """x: [B, n_feature] -> [B, 1] float32."""
    B, F = x.shape
    H = params["w_in"].shape[0]

    # Small-batch fast path: padding to a 128-row tile and paying the Pallas
    # launch/grid-step overhead is slower than a fused XLA GEMM of this size.
    if B < 128:
        return _xla_forward(x.astype(jnp.float32), params)

    if block_b is None:
        # Pick the biggest tile that (a) amortizes the ~0.35 us per-grid-step
        # overhead and (b) still yields >= 2 grid steps whenever B allows it,
        # so "parallel" grid sharding keeps both v7x TensorCores busy.
        # Even a 2048 x F f32 tile (F=32 -> 256 KiB) double-buffered is
        # trivially inside VMEM on every generation (v7x: 64 MiB).
        block_b = min(2048, max(128, _round_up(pl.cdiv(B, 2), 128)))
    block_b = max(128, _round_up(block_b, 128))

    B_pad = _round_up(B, block_b)
    if B_pad != B:
        # Pad instead of asserting divisibility: tail rows are computed on
        # zeros and sliced off below.
        x = jnp.pad(x, ((0, B_pad - B), (0, 0)))
    grid = (B_pad // block_b,)

    # bf16 copies of the hidden-layer weights (native MXU input, half the
    # DMA). Biases and the two N=1 head columns stay f32 (VPU work).
    w_in_bf = params["w_in"].astype(jnp.bfloat16)
    w_h1_bf = params["w_h1"].astype(jnp.bfloat16)
    w_h2_bf = params["w_h2"].astype(jnp.bfloat16)

    def _full(shape):
        # Whole (tiny) weight/bias tensors resident in VMEM for every step.
        return pl.BlockSpec(shape, lambda i: tuple(0 for _ in shape))

    in_specs = [
        pl.BlockSpec((block_b, F), lambda i: (i, 0)),   # x tile over batch rows
        _full((H, F)), _full((H, 1)),                   # fc_in   (w bf16, b f32)
        _full((H, H)), _full((H, 1)),                   # fc_h1
        _full((H, H)), _full((H, 1)),                   # fc_h2
        _full((H, 1)), _full((1, 1)),                   # fc_out  (f32)
        _full((F, 1)), _full((1, 1)),                   # single_fc (f32)
    ]
    # Lane-dense output: one (1, block_b) row per grid step (batch on lanes).
    out_spec = pl.BlockSpec((1, block_b), lambda i: (0, i))

    y_row = pl.pallas_call(
        _discriminator_kernel,
        out_shape=jax.ShapeDtypeStruct((1, B_pad), jnp.float32),
        grid_spec=pltpu.PrefetchScalarGridSpec(
            num_scalar_prefetch=0,
            grid=grid,
            in_specs=in_specs,
            out_specs=out_spec,
        ),
        compiler_params=pltpu.CompilerParams(
            dimension_semantics=("parallel",),
        ),
    )(
        x,
        w_in_bf, params["b_in"],
        w_h1_bf, params["b_h1"],
        w_h2_bf, params["b_h2"],
        params["w_out"], params["b_out"],
        params["w_sfc"], params["b_sfc"],
    )
    return y_row[0, :B][:, None]   # back to [B, 1]


def _xavier_uniform(key, shape, fan_in, fan_out):
    # torch.nn.init.xavier_uniform_ (gain=1).
    bound = (6.0 / (fan_in + fan_out)) ** 0.5
    return jax.random.uniform(key, shape, jnp.float32, -bound, bound)


def _linear_bias(key, fan_in, shape):
    # PyTorch nn.Linear default bias init: U(-1/sqrt(fan_in), 1/sqrt(fan_in)).
    bound = 1.0 / (fan_in ** 0.5)
    return jax.random.uniform(key, shape, jnp.float32, -bound, bound)


def init_discriminator_params(key, n_feature, n_hidden):
    ks = jax.random.split(key, 10)
    return {
        # Weights in PyTorch layout [out, in]; biases as [out, 1] columns.
        "w_in": _xavier_uniform(ks[0], (n_hidden, n_feature), n_feature, n_hidden),
        "b_in": _linear_bias(ks[1], n_feature, (n_hidden, 1)),
        "w_h1": _xavier_uniform(ks[2], (n_hidden, n_hidden), n_hidden, n_hidden),
        "b_h1": _linear_bias(ks[3], n_hidden, (n_hidden, 1)),
        "w_h2": _xavier_uniform(ks[4], (n_hidden, n_hidden), n_hidden, n_hidden),
        "b_h2": _linear_bias(ks[5], n_hidden, (n_hidden, 1)),
        "w_out": _xavier_uniform(ks[6], (n_hidden, 1), n_hidden, 1),
        "b_out": _linear_bias(ks[7], n_hidden, (1, 1)),
        "w_sfc": _xavier_uniform(ks[8], (n_feature, 1), n_feature, 1),
        "b_sfc": _linear_bias(ks[9], n_feature, (1, 1)),
    }


def _reference_forward_f32(x, p):
    h = jnp.tanh(x @ p["w_in"].T + p["b_in"].T)
    h = jnp.tanh(h @ p["w_h1"].T + p["b_h1"].T)
    h = jnp.tanh(h @ p["w_h2"].T + p["b_h2"].T)
    out = h @ p["w_out"] + p["b_out"].T
    skip = jnp.maximum(x @ p["w_sfc"] + p["b_sfc"].T, 0.0)
    return out + skip


if __name__ == "__main__":
    key = jax.random.PRNGKey(0)
    k_param, k_x1, k_x2 = jax.random.split(key, 3)

    n_feature, n_hidden = 32, 32  # action_space is unused by forward()
    params = init_discriminator_params(k_param, n_feature, n_hidden)

    # --- Pallas path: batch >= 128, yields 2 grid steps (both v7x TCs busy).
    batch = 256
    x = jax.random.normal(k_x1, (batch, n_feature), jnp.float32)
    y = discriminator_forward(x, params)
    y = jax.block_until_ready(y)

    y_ref = _reference_forward_f32(x, params)
    assert y.shape == (batch, 1)
    # Kernel uses bf16 MXU operands with f32 accumulation -> loosened tolerance
    # vs. the pure-f32 reference (see perf-review correctness note).
    assert jnp.allclose(y, y_ref, atol=3e-2, rtol=3e-2), "Pallas path mismatch vs. f32 reference"

    # --- Small-batch fast path (B < 128): plain fused XLA, exact f32.
    batch_small = 16
    xs = jax.random.normal(k_x2, (batch_small, n_feature), jnp.float32)
    ys = jax.block_until_ready(discriminator_forward(xs, params))
    ys_ref = _reference_forward_f32(xs, params)
    assert ys.shape == (batch_small, 1)
    assert jnp.allclose(ys, ys_ref, atol=1e-4, rtol=1e-4), "small-batch path mismatch"

    print("KERNEL_OK")
</pallas_src>

<mosaic_0001>
module attributes {stable_mosaic.version = 11 : i64} {
  func.func @_discriminator_kernel(%arg0: i32, %arg1: memref<128x32xf32, #tpu.memory_space<vmem>>, %arg2: memref<32x32xbf16, #tpu.memory_space<vmem>>, %arg3: memref<32x1xf32, #tpu.memory_space<vmem>>, %arg4: memref<32x32xbf16, #tpu.memory_space<vmem>>, %arg5: memref<32x1xf32, #tpu.memory_space<vmem>>, %arg6: memref<32x32xbf16, #tpu.memory_space<vmem>>, %arg7: memref<32x1xf32, #tpu.memory_space<vmem>>, %arg8: memref<32x1xf32, #tpu.memory_space<vmem>>, %arg9: memref<1x1xf32, #tpu.memory_space<vmem>>, %arg10: memref<32x1xf32, #tpu.memory_space<vmem>>, %arg11: memref<1x1xf32, #tpu.memory_space<vmem>>, %arg12: memref<1x128xf32, #tpu.memory_space<vmem>>) attributes {dimension_semantics = [#tpu.dimension_semantics<parallel>], iteration_bounds = array<i64: 2>, scalar_prefetch = 0 : i64, scratch_operands = 0 : i64, tpu.core_type = #tpu.core_type<tc>, window_params = [{transform_indices = @transform_0, window_bounds = array<i64: 128, 32>}, {pipeline_mode = #tpu.pipeline_mode<synchronous>, transform_indices = @transform_1, window_bounds = array<i64: 32, 32>}, {pipeline_mode = #tpu.pipeline_mode<synchronous>, transform_indices = @transform_2, window_bounds = array<i64: 32, 1>}, {pipeline_mode = #tpu.pipeline_mode<synchronous>, transform_indices = @transform_3, window_bounds = array<i64: 32, 32>}, {pipeline_mode = #tpu.pipeline_mode<synchronous>, transform_indices = @transform_4, window_bounds = array<i64: 32, 1>}, {pipeline_mode = #tpu.pipeline_mode<synchronous>, transform_indices = @transform_5, window_bounds = array<i64: 32, 32>}, {pipeline_mode = #tpu.pipeline_mode<synchronous>, transform_indices = @transform_6, window_bounds = array<i64: 32, 1>}, {pipeline_mode = #tpu.pipeline_mode<synchronous>, transform_indices = @transform_7, window_bounds = array<i64: 32, 1>}, {pipeline_mode = #tpu.pipeline_mode<synchronous>, transform_indices = @transform_8, window_bounds = array<i64: 1, 1>}, {pipeline_mode = #tpu.pipeline_mode<synchronous>, transform_indices = @transform_9, window_bounds = array<i64: 32, 1>}, {pipeline_mode = #tpu.pipeline_mode<synchronous>, transform_indices = @transform_10, window_bounds = array<i64: 1, 1>}, {transform_indices = @transform_11, window_bounds = array<i64: 1, 128>}]} {
    %c0 = arith.constant 0 : index
    %c0_0 = arith.constant 0 : index
    %0 = vector.load %arg1[%c0, %c0_0] : memref<128x32xf32, #tpu.memory_space<vmem>>, vector<128x32xf32>
    %1 = arith.truncf %0 : vector<128x32xf32> to vector<128x32xbf16>
    %2 = tpu.transpose %1, [1, 0] : vector<128x32xbf16> -> vector<32x128xbf16>
    %c0_1 = arith.constant 0 : index
    %c0_2 = arith.constant 0 : index
    %3 = vector.load %arg2[%c0_1, %c0_2] : memref<32x32xbf16, #tpu.memory_space<vmem>>, vector<32x32xbf16>
    %cst = arith.constant dense<0.000000e+00> : vector<32x128xf32>
    %4 = tpu.matmul %3, %2, %cst {dimension_numbers = #tpu.dot_dimension_numbers<[1], [0], [0], [1], [0, 0, 1, 1], [], []>} : vector<32x32xbf16>, vector<32x128xbf16>, vector<32x128xf32> -> vector<32x128xf32>
    %c0_3 = arith.constant 0 : index
    %c0_4 = arith.constant 0 : index
    %5 = vector.load %arg3[%c0_3, %c0_4] : memref<32x1xf32, #tpu.memory_space<vmem>>, vector<32x1xf32>
    %6 = vector.broadcast %5 : vector<32x1xf32> to vector<32x128xf32>
    %7 = arith.addf %4, %6 : vector<32x128xf32>
    %8 = math.tanh %7 : vector<32x128xf32>
    %c0_5 = arith.constant 0 : index
    %c0_6 = arith.constant 0 : index
    %9 = vector.load %arg4[%c0_5, %c0_6] : memref<32x32xbf16, #tpu.memory_space<vmem>>, vector<32x32xbf16>
    %10 = arith.truncf %8 : vector<32x128xf32> to vector<32x128xbf16>
    %cst_7 = arith.constant dense<0.000000e+00> : vector<32x128xf32>
    %11 = tpu.matmul %9, %10, %cst_7 {dimension_numbers = #tpu.dot_dimension_numbers<[1], [0], [0], [1], [0, 0, 1, 1], [], []>} : vector<32x32xbf16>, vector<32x128xbf16>, vector<32x128xf32> -> vector<32x128xf32>
    %c0_8 = arith.constant 0 : index
    %c0_9 = arith.constant 0 : index
    %12 = vector.load %arg5[%c0_8, %c0_9] : memref<32x1xf32, #tpu.memory_space<vmem>>, vector<32x1xf32>
    %13 = vector.broadcast %12 : vector<32x1xf32> to vector<32x128xf32>
    %14 = arith.addf %11, %13 : vector<32x128xf32>
    %15 = math.tanh %14 : vector<32x128xf32>
    %c0_10 = arith.constant 0 : index
    %c0_11 = arith.constant 0 : index
    %16 = vector.load %arg6[%c0_10, %c0_11] : memref<32x32xbf16, #tpu.memory_space<vmem>>, vector<32x32xbf16>
    %17 = arith.truncf %15 : vector<32x128xf32> to vector<32x128xbf16>
    %cst_12 = arith.constant dense<0.000000e+00> : vector<32x128xf32>
    %18 = tpu.matmul %16, %17, %cst_12 {dimension_numbers = #tpu.dot_dimension_numbers<[1], [0], [0], [1], [0, 0, 1, 1], [], []>} : vector<32x32xbf16>, vector<32x128xbf16>, vector<32x128xf32> -> vector<32x128xf32>
    %c0_13 = arith.constant 0 : index
    %c0_14 = arith.constant 0 : index
    %19 = vector.load %arg7[%c0_13, %c0_14] : memref<32x1xf32, #tpu.memory_space<vmem>>, vector<32x1xf32>
    %20 = vector.broadcast %19 : vector<32x1xf32> to vector<32x128xf32>
    %21 = arith.addf %18, %20 : vector<32x128xf32>
    %22 = math.tanh %21 : vector<32x128xf32>
    %c0_15 = arith.constant 0 : index
    %c0_16 = arith.constant 0 : index
    %23 = vector.load %arg8[%c0_15, %c0_16] : memref<32x1xf32, #tpu.memory_space<vmem>>, vector<32x1xf32>
    %24 = vector.broadcast %23 : vector<32x1xf32> to vector<32x128xf32>
    %25 = arith.mulf %22, %24 : vector<32x128xf32>
    %cst_17 = arith.constant dense<0.000000e+00> : vector<128xf32>
    %26 = vector.multi_reduction <add>, %25, %cst_17 [0] : vector<32x128xf32> to vector<128xf32>
    %27 = vector.shape_cast %26 : vector<128xf32> to vector<1x128xf32>
    %c0_18 = arith.constant 0 : index
    %c0_19 = arith.constant 0 : index
    %28 = vector.load %arg9[%c0_18, %c0_19] : memref<1x1xf32, #tpu.memory_space<vmem>>, vector<1x1xf32>
    %29 = vector.broadcast %28 : vector<1x1xf32> to vector<1x128xf32>
    %30 = arith.addf %27, %29 : vector<1x128xf32>
    %31 = arith.extf %2 : vector<32x128xbf16> to vector<32x128xf32>
    %c0_20 = arith.constant 0 : index
    %c0_21 = arith.constant 0 : index
    %32 = vector.load %arg10[%c0_20, %c0_21] : memref<32x1xf32, #tpu.memory_space<vmem>>, vector<32x1xf32>
    %33 = vector.broadcast %32 : vector<32x1xf32> to vector<32x128xf32>
    %34 = arith.mulf %31, %33 : vector<32x128xf32>
    %cst_22 = arith.constant dense<0.000000e+00> : vector<128xf32>
    %35 = vector.multi_reduction <add>, %34, %cst_22 [0] : vector<32x128xf32> to vector<128xf32>
    %36 = vector.shape_cast %35 : vector<128xf32> to vector<1x128xf32>
    %c0_23 = arith.constant 0 : index
    %c0_24 = arith.constant 0 : index
    %37 = vector.load %arg11[%c0_23, %c0_24] : memref<1x1xf32, #tpu.memory_space<vmem>>, vector<1x1xf32>
    %38 = vector.broadcast %37 : vector<1x1xf32> to vector<1x128xf32>
    %39 = arith.addf %36, %38 : vector<1x128xf32>
    %cst_25 = arith.constant 0.000000e+00 : f32
    %40 = vector.broadcast %cst_25 : f32 to vector<1x128xf32>
    %41 = arith.maximumf %39, %40 : vector<1x128xf32>
    %42 = arith.addf %30, %41 : vector<1x128xf32>
    %c0_26 = arith.constant 0 : index
    %c0_27 = arith.constant 0 : index
    %43 = vector.load %arg12[%c0_26, %c0_27] : memref<1x128xf32, #tpu.memory_space<vmem>>, vector<1x128xf32>
    tpu.vector_store %arg12[%c0_26, %c0_27], %42 {strides = array<i32>} : memref<1x128xf32, #tpu.memory_space<vmem>>, vector<1x128xf32>,
    return
  }
  func.func @transform_0(%arg0: i32) -> (i32, i32) {
    %c0_i32 = arith.constant 0 : i32
    %c0_i32_0 = arith.constant 0 : i32
    return %arg0, %c0_i32 : i32, i32
  }
  func.func @transform_1(%arg0: i32) -> (i32, i32) {
    %c0_i32 = arith.constant 0 : i32
    %c0_i32_0 = arith.constant 0 : i32
    %c0_i32_1 = arith.constant 0 : i32
    return %c0_i32, %c0_i32_0 : i32, i32
  }
  func.func @transform_2(%arg0: i32) -> (i32, i32) {
    %c0_i32 = arith.constant 0 : i32
    %c0_i32_0 = arith.constant 0 : i32
    %c0_i32_1 = arith.constant 0 : i32
    return %c0_i32, %c0_i32_0 : i32, i32
  }
  func.func @transform_3(%arg0: i32) -> (i32, i32) {
    %c0_i32 = arith.constant 0 : i32
    %c0_i32_0 = arith.constant 0 : i32
    %c0_i32_1 = arith.constant 0 : i32
    return %c0_i32, %c0_i32_0 : i32, i32
  }
  func.func @transform_4(%arg0: i32) -> (i32, i32) {
    %c0_i32 = arith.constant 0 : i32
    %c0_i32_0 = arith.constant 0 : i32
    %c0_i32_1 = arith.constant 0 : i32
    return %c0_i32, %c0_i32_0 : i32, i32
  }
  func.func @transform_5(%arg0: i32) -> (i32, i32) {
    %c0_i32 = arith.constant 0 : i32
    %c0_i32_0 = arith.constant 0 : i32
    %c0_i32_1 = arith.constant 0 : i32
    return %c0_i32, %c0_i32_0 : i32, i32
  }
  func.func @transform_6(%arg0: i32) -> (i32, i32) {
    %c0_i32 = arith.constant 0 : i32
    %c0_i32_0 = arith.constant 0 : i32
    %c0_i32_1 = arith.constant 0 : i32
    return %c0_i32, %c0_i32_0 : i32, i32
  }
  func.func @transform_7(%arg0: i32) -> (i32, i32) {
    %c0_i32 = arith.constant 0 : i32
    %c0_i32_0 = arith.constant 0 : i32
    %c0_i32_1 = arith.constant 0 : i32
    return %c0_i32, %c0_i32_0 : i32, i32
  }
  func.func @transform_8(%arg0: i32) -> (i32, i32) {
    %c0_i32 = arith.constant 0 : i32
    %c0_i32_0 = arith.constant 0 : i32
    %c0_i32_1 = arith.constant 0 : i32
    return %c0_i32, %c0_i32_0 : i32, i32
  }
  func.func @transform_9(%arg0: i32) -> (i32, i32) {
    %c0_i32 = arith.constant 0 : i32
    %c0_i32_0 = arith.constant 0 : i32
    %c0_i32_1 = arith.constant 0 : i32
    return %c0_i32, %c0_i32_0 : i32, i32
  }
  func.func @transform_10(%arg0: i32) -> (i32, i32) {
    %c0_i32 = arith.constant 0 : i32
    %c0_i32_0 = arith.constant 0 : i32
    %c0_i32_1 = arith.constant 0 : i32
    return %c0_i32, %c0_i32_0 : i32, i32
  }
  func.func @transform_11(%arg0: i32) -> (i32, i32) {
    %c0_i32 = arith.constant 0 : i32
    %c0_i32_0 = arith.constant 0 : i32
    return %c0_i32, %arg0 : i32, i32
  }
}

</mosaic_0001>

<llo_original>
// kernel: discriminator_forward.1
$region0: #{discriminator_forward.1}
  #allocation0 [shape = 'u32[]', space=smem, size = 0x4, offset = 0x4, fixed_abs, tag = 'smem constant byte address 0x4 - core index']
  #allocation1 [shape = 'u32[72,128]{1,0:T(1,128)}', space=vmem, size = 0x9000, scoped, tag = 'internal scratch']
  #allocation2 [shape = 'f32[1,1]{1,0:T(1,128)S(1)}', space=vmem, size = 0x200, scoped, tag = 'scoped memory for discriminator_forward.1']
  #allocation3 [shape = 'f32[1,1]{1,0:T(1,128)S(1)}', space=vmem, size = 0x200, scoped, tag = 'scoped memory for discriminator_forward.1']
  %s0 = inlined_call_operand.vmem [shape: f32[256,32], index: 0, kind: input, shape index: {}]
  %s1 = inlined_call_operand.vmem [shape: bf16[32,32], index: 1, kind: input, shape index: {}]
  %s2 = inlined_call_operand.vmem [shape: f32[32,1], index: 2, kind: input, shape index: {}]
  %s3 = inlined_call_operand.vmem [shape: bf16[32,32], index: 3, kind: input, shape index: {}]
  %s4 = inlined_call_operand.vmem [shape: f32[32,1], index: 4, kind: input, shape index: {}]
  %s5 = inlined_call_operand.vmem [shape: bf16[32,32], index: 5, kind: input, shape index: {}]
  %s6 = inlined_call_operand.vmem [shape: f32[32,1], index: 6, kind: input, shape index: {}]
  %s7 = inlined_call_operand.vmem [shape: f32[32,1], index: 7, kind: input, shape index: {}]
  %s8 = inlined_call_operand.<no memory space> [shape: f32[1,1], index: 8, kind: input, shape index: {}]
  %s9 = inlined_call_operand.vmem [shape: f32[32,1], index: 9, kind: input, shape index: {}]
  %s10 = inlined_call_operand.<no memory space> [shape: f32[1,1], index: 10, kind: input, shape index: {}]
  %s11 = inlined_call_operand.hbm [shape: f32[1,256], index: 11, kind: output, shape index: {}]
  %s12 = sld [smem:[#allocation0]]
  $region77: #{discriminator_forward.1} parent=0
    _
  %s14 = ssub.s32 1, %s12
  %s15 = scalar_select 0, %s14, %s12
  %v16 = vstv %s8
  %17 = vst [vmem:[#allocation2] sm:$0x1] %v16
  %v18 = vstv %s10
  %19 = vst [vmem:[#allocation3] sm:$0x1] %v18
  $region1: #{discriminator_forward.1} parent=0
    #allocation4 [shape = 'u8[1024]{0}', space=vmem, size = 0x400, scoped, tag = 'output window, operand 0']
    #allocation5 [shape = 's32[2]{0}', space=sflag, size = 0x8, scoped, tag = 'scoped memory for discriminator_forward.1']
    %20 = vsyncpa [#allocation5], 0
    %s21 = scalar_lea.sflag [#allocation5], 1
    %22 = vsyncpa %s21, 0
    loop: start=0, step=1, limit=4
    $region2: #{discriminator_forward.1} parent=1 // loop_pre_header
      _
    $region3: #{discriminator_forward.1} parent=1 // loop_header
      %s24 = sphi 0, %s28
      %p25 = scmp.ge.s32.totalorder %s24, 4
      %s34 = sphi 0, %s36
      %s37 = sphi 0, %s34
      %s38 = sphi 0, %s37
      %s54 = sphi 0, %s38
      %s58 = sphi 0, %s58
      %s60 = sphi 0, %s58
      %s61 = sphi 0, %s60
      %s75 = sphi 0, %s61
      %s79 = sphi 0, %s79
      %s81 = sphi 0, %s79
      %s82 = sphi 0, %s81
      %s96 = sphi 0, %s82
      %s100 = sphi 0, %s100
      %s102 = sphi 0, %s100
      %s103 = sphi 0, %s102
      %s117 = sphi 0, %s103
      %s121 = sphi 0, %s121
      %s123 = sphi 0, %s121
      %s124 = sphi 0, %s123
      %s138 = sphi 0, %s124
      %s142 = sphi 0, %s142
      %s144 = sphi 0, %s142
      %s145 = sphi 0, %s144
      %s159 = sphi 0, %s145
      %s163 = sphi 0, %s163
      %s165 = sphi 0, %s163
      %s166 = sphi 0, %s165
      %s180 = sphi 0, %s166
      %s184 = sphi 0, %s184
      %s186 = sphi 0, %s184
      %s187 = sphi 0, %s186
      %s201 = sphi 0, %s187
      %s205 = sphi 0, %s205
      %s207 = sphi 0, %s205
      %s208 = sphi 0, %s207
      %s222 = sphi 0, %s208
      %s226 = sphi 0, %s226
      %s228 = sphi 0, %s226
      %s229 = sphi 0, %s228
      %s243 = sphi 0, %s229
      %s247 = sphi 0, %s247
      %s249 = sphi 0, %s247
      %s250 = sphi 0, %s249
      %s264 = sphi 0, %s250
      %s270 = sphi 0, %s272
      %s273 = sphi 0, %s270
      %s274 = sphi 0, %s273
      %s290 = sphi 0, %s274
    $region4: #{discriminator_forward.1} parent=1 // loop_header_branch
      %27 = sbr.rel (%p25) target = $region8
    $region5: #{discriminator_forward.1} parent=1 // loop_body
      %s29 = ssub.s32 %s24, 1
      %s30 = ssub.s32 %s24, 2
      %s31 = sadd.s32 %s24, 1
      %s32 = ssub.s32 %s24, %s31
      %p33 = scmp.eq.s32.totalorder %s32, 0
      %s35 = sadd.s32 %s34, 1
      %s36 = scalar_select %p33, %s34, %s35
      %p39 = pneg %p33
      %p40 = scmp.eq.s32.totalorder %s24, 1
      %p41 = por %p39, %p40
      %p42 = scmp.ne.s32.totalorder %s34, %s37
      %p43 = scmp.eq.s32.totalorder %s24, 0
      %p44 = por %p42, %p43
      %p45 = scmp.ne.s32.totalorder %s34, %s37
      %p46 = scmp.eq.s32.totalorder %s29, 1
      %p47 = por %p45, %p46
      %p48 = scmp.ne.s32.totalorder %s37, %s38
      %p49 = scmp.eq.s32.totalorder %s29, 0
      %p50 = por %p48, %p49
      %p51 = scmp.ne.s32.totalorder %s37, %s38
      %p52 = scmp.eq.s32.totalorder %s30, 1
      %p53 = por %p51, %p52
      %p55 = scmp.ne.s32.totalorder %s38, %s54
      %p56 = scmp.eq.s32.totalorder %s30, 0
      %p57 = por %p55, %p56
      %s59 = sadd.s32 %s58, 1
      %p62 = scmp.eq.s32.totalorder %s24, 1
      %p63 = scmp.ne.s32.totalorder %s58, %s60
      %p64 = scmp.eq.s32.totalorder %s24, 0
      %p65 = por %p63, %p64
      %p66 = scmp.ne.s32.totalorder %s58, %s60
      %p67 = scmp.eq.s32.totalorder %s29, 1
      %p68 = por %p66, %p67
      %p69 = scmp.ne.s32.totalorder %s60, %s61
      %p70 = scmp.eq.s32.totalorder %s29, 0
      %p71 = por %p69, %p70
      %p72 = scmp.ne.s32.totalorder %s60, %s61
      %p73 = scmp.eq.s32.totalorder %s30, 1
      %p74 = por %p72, %p73
      %p76 = scmp.ne.s32.totalorder %s61, %s75
      %p77 = scmp.eq.s32.totalorder %s30, 0
      %p78 = por %p76, %p77
      %s80 = sadd.s32 %s79, 1
      %p83 = scmp.eq.s32.totalorder %s24, 1
      %p84 = scmp.ne.s32.totalorder %s79, %s81
      %p85 = scmp.eq.s32.totalorder %s24, 0
      %p86 = por %p84, %p85
      %p87 = scmp.ne.s32.totalorder %s79, %s81
      %p88 = scmp.eq.s32.totalorder %s29, 1
      %p89 = por %p87, %p88
      %p90 = scmp.ne.s32.totalorder %s81, %s82
      %p91 = scmp.eq.s32.totalorder %s29, 0
      %p92 = por %p90, %p91
      %p93 = scmp.ne.s32.totalorder %s81, %s82
      %p94 = scmp.eq.s32.totalorder %s30, 1
      %p95 = por %p93, %p94
      %p97 = scmp.ne.s32.totalorder %s82, %s96
      %p98 = scmp.eq.s32.totalorder %s30, 0
      %p99 = por %p97, %p98
      %s101 = sadd.s32 %s100, 1
      %p104 = scmp.eq.s32.totalorder %s24, 1
      %p105 = scmp.ne.s32.totalorder %s100, %s102
      %p106 = scmp.eq.s32.totalorder %s24, 0
      %p107 = por %p105, %p106
      %p108 = scmp.ne.s32.totalorder %s100, %s102
      %p109 = scmp.eq.s32.totalorder %s29, 1
      %p110 = por %p108, %p109
      %p111 = scmp.ne.s32.totalorder %s102, %s103
      %p112 = scmp.eq.s32.totalorder %s29, 0
      %p113 = por %p111, %p112
      %p114 = scmp.ne.s32.totalorder %s102, %s103
      %p115 = scmp.eq.s32.totalorder %s30, 1
      %p116 = por %p114, %p115
      %p118 = scmp.ne.s32.totalorder %s103, %s117
      %p119 = scmp.eq.s32.totalorder %s30, 0
      %p120 = por %p118, %p119
      %s122 = sadd.s32 %s121, 1
      %p125 = scmp.eq.s32.totalorder %s24, 1
      %p126 = scmp.ne.s32.totalorder %s121, %s123
      %p127 = scmp.eq.s32.totalorder %s24, 0
      %p128 = por %p126, %p127
      %p129 = scmp.ne.s32.totalorder %s121, %s123
      %p130 = scmp.eq.s32.totalorder %s29, 1
      %p131 = por %p129, %p130
      %p132 = scmp.ne.s32.totalorder %s123, %s124
      %p133 = scmp.eq.s32.totalorder %s29, 0
      %p134 = por %p132, %p133
      %p135 = scmp.ne.s32.totalorder %s123, %s124
      %p136 = scmp.eq.s32.totalorder %s30, 1
      %p137 = por %p135, %p136
      %p139 = scmp.ne.s32.totalorder %s124, %s138
      %p140 = scmp.eq.s32.totalorder %s30, 0
      %p141 = por %p139, %p140
      %s143 = sadd.s32 %s142, 1
      %p146 = scmp.eq.s32.totalorder %s24, 1
      %p147 = scmp.ne.s32.totalorder %s142, %s144
      %p148 = scmp.eq.s32.totalorder %s24, 0
      %p149 = por %p147, %p148
      %p150 = scmp.ne.s32.totalorder %s142, %s144
      %p151 = scmp.eq.s32.totalorder %s29, 1
      %p152 = por %p150, %p151
      %p153 = scmp.ne.s32.totalorder %s144, %s145
      %p154 = scmp.eq.s32.totalorder %s29, 0
      %p155 = por %p153, %p154
      %p156 = scmp.ne.s32.totalorder %s144, %s145
      %p157 = scmp.eq.s32.totalorder %s30, 1
      %p158 = por %p156, %p157
      %p160 = scmp.ne.s32.totalorder %s145, %s159
      %p161 = scmp.eq.s32.totalorder %s30, 0
      %p162 = por %p160, %p161
      %s164 = sadd.s32 %s163, 1
      %p167 = scmp.eq.s32.totalorder %s24, 1
      %p168 = scmp.ne.s32.totalorder %s163, %s165
      %p169 = scmp.eq.s32.totalorder %s24, 0
      %p170 = por %p168, %p169
      %p171 = scmp.ne.s32.totalorder %s163, %s165
      %p172 = scmp.eq.s32.totalorder %s29, 1
      %p173 = por %p171, %p172
      %p174 = scmp.ne.s32.totalorder %s165, %s166
      %p175 = scmp.eq.s32.totalorder %s29, 0
      %p176 = por %p174, %p175
      %p177 = scmp.ne.s32.totalorder %s165, %s166
      %p178 = scmp.eq.s32.totalorder %s30, 1
      %p179 = por %p177, %p178
      %p181 = scmp.ne.s32.totalorder %s166, %s180
      %p182 = scmp.eq.s32.totalorder %s30, 0
      %p183 = por %p181, %p182
      %s185 = sadd.s32 %s184, 1
      %p188 = scmp.eq.s32.totalorder %s24, 1
      %p189 = scmp.ne.s32.totalorder %s184, %s186
      %p190 = scmp.eq.s32.totalorder %s24, 0
      %p191 = por %p189, %p190
      %p192 = scmp.ne.s32.totalorder %s184, %s186
      %p193 = scmp.eq.s32.totalorder %s29, 1
      %p194 = por %p192, %p193
      %p195 = scmp.ne.s32.totalorder %s186, %s187
      %p196 = scmp.eq.s32.totalorder %s29, 0
      %p197 = por %p195, %p196
      %p198 = scmp.ne.s32.totalorder %s186, %s187
      %p199 = scmp.eq.s32.totalorder %s30, 1
      %p200 = por %p198, %p199
      %p202 = scmp.ne.s32.totalorder %s187, %s201
      %p203 = scmp.eq.s32.totalorder %s30, 0
      %p204 = por %p202, %p203
      %s206 = sadd.s32 %s205, 1
      %p209 = scmp.eq.s32.totalorder %s24, 1
      %p210 = scmp.ne.s32.totalorder %s205, %s207
      %p211 = scmp.eq.s32.totalorder %s24, 0
      %p212 = por %p210, %p211
      %p213 = scmp.ne.s32.totalorder %s205, %s207
      %p214 = scmp.eq.s32.totalorder %s29, 1
      %p215 = por %p213, %p214
      %p216 = scmp.ne.s32.totalorder %s207, %s208
      %p217 = scmp.eq.s32.totalorder %s29, 0
      %p218 = por %p216, %p217
      %p219 = scmp.ne.s32.totalorder %s207, %s208
      %p220 = scmp.eq.s32.totalorder %s30, 1
      %p221 = por %p219, %p220
      %p223 = scmp.ne.s32.totalorder %s208, %s222
      %p224 = scmp.eq.s32.totalorder %s30, 0
      %p225 = por %p223, %p224
      %s227 = sadd.s32 %s226, 1
      %p230 = scmp.eq.s32.totalorder %s24, 1
      %p231 = scmp.ne.s32.totalorder %s226, %s228
      %p232 = scmp.eq.s32.totalorder %s24, 0
      %p233 = por %p231, %p232
      %p234 = scmp.ne.s32.totalorder %s226, %s228
      %p235 = scmp.eq.s32.totalorder %s29, 1
      %p236 = por %p234, %p235
      %p237 = scmp.ne.s32.totalorder %s228, %s229
      %p238 = scmp.eq.s32.totalorder %s29, 0
      %p239 = por %p237, %p238
      %p240 = scmp.ne.s32.totalorder %s228, %s229
      %p241 = scmp.eq.s32.totalorder %s30, 1
      %p242 = por %p240, %p241
      %p244 = scmp.ne.s32.totalorder %s229, %s243
      %p245 = scmp.eq.s32.totalorder %s30, 0
      %p246 = por %p244, %p245
      %s248 = sadd.s32 %s247, 1
      %p251 = scmp.eq.s32.totalorder %s24, 1
      %p252 = scmp.ne.s32.totalorder %s247, %s249
      %p253 = scmp.eq.s32.totalorder %s24, 0
      %p254 = por %p252, %p253
      %p255 = scmp.ne.s32.totalorder %s247, %s249
      %p256 = scmp.eq.s32.totalorder %s29, 1
      %p257 = por %p255, %p256
      %p258 = scmp.ne.s32.totalorder %s249, %s250
      %p259 = scmp.eq.s32.totalorder %s29, 0
      %p260 = por %p258, %p259
      %p261 = scmp.ne.s32.totalorder %s249, %s250
      %p262 = scmp.eq.s32.totalorder %s30, 1
      %p263 = por %p261, %p262
      %p265 = scmp.ne.s32.totalorder %s250, %s264
      %p266 = scmp.eq.s32.totalorder %s30, 0
      %p267 = por %p265, %p266
      %s268 = ssub.s32 %s24, %s31
      %p269 = scmp.eq.s32.totalorder %s268, 0
      %s271 = sadd.s32 %s270, 1
      %s272 = scalar_select %p269, %s270, %s271
      %p275 = pneg %p269
      %p276 = scmp.eq.s32.totalorder %s24, 1
      %p277 = por %p275, %p276
      %p278 = scmp.ne.s32.totalorder %s270, %s273
      %p279 = scmp.eq.s32.totalorder %s24, 0
      %p280 = por %p278, %p279
      %p281 = scmp.ne.s32.totalorder %s270, %s273
      %p282 = scmp.eq.s32.totalorder %s29, 1
      %p283 = por %p281, %p282
      %p284 = scmp.ne.s32.totalorder %s273, %s274
      %p285 = scmp.eq.s32.totalorder %s29, 0
      %p286 = por %p284, %p285
      %p287 = scmp.ne.s32.totalorder %s273, %s274
      %p288 = scmp.eq.s32.totalorder %s30, 1
      %p289 = por %p287, %p288
      %p291 = scmp.ne.s32.totalorder %s274, %s290
      %p292 = scmp.eq.s32.totalorder %s30, 0
      %p293 = por %p291, %p292
      %p294 = scmp.le.s32.totalorder 1, %s24
      %p295 = scmp.lt.s32.totalorder %s24, 3
      %p296 = pnand %p294, %p295
      %p297 = pneg %p296
      // Predicated region
      $region9: #{discriminator_forward.1} parent=5 // pred_check
        _
      $region10: #{discriminator_forward.1} parent=5 // pred_check_branch
        %299 = sbr.rel (%p296) target = $region12
      $region11: #{discriminator_forward.1} parent=5 // pred_region
        %s300 = ssub.s32 %s24, 1
        // Predicated region
        $region13: #{discriminator_forward.1} parent=11 // pred_check
          %p301 = pneg %p71
        $region14: #{discriminator_forward.1} parent=11 // pred_check_branch
          %303 = sbr.rel (%p301) target = $region16
        $region15: #{discriminator_forward.1} parent=11 // pred_region
          _
        $region16: #{discriminator_forward.1} parent=11 // pred_fallthru
          _
        // Predicated region
        $region17: #{discriminator_forward.1} parent=11 // pred_check
          %p304 = pneg %p92
        $region18: #{discriminator_forward.1} parent=11 // pred_check_branch
          %306 = sbr.rel (%p304) target = $region20
        $region19: #{discriminator_forward.1} parent=11 // pred_region
          _
        $region20: #{discriminator_forward.1} parent=11 // pred_fallthru
          _
        // Predicated region
        $region21: #{discriminator_forward.1} parent=11 // pred_check
          %p307 = pneg %p113
        $region22: #{discriminator_forward.1} parent=11 // pred_check_branch
          %309 = sbr.rel (%p307) target = $region24
        $region23: #{discriminator_forward.1} parent=11 // pred_region
          _
        $region24: #{discriminator_forward.1} parent=11 // pred_fallthru
          _
        // Predicated region
        $region25: #{discriminator_forward.1} parent=11 // pred_check
          %p310 = pneg %p134
        $region26: #{discriminator_forward.1} parent=11 // pred_check_branch
          %312 = sbr.rel (%p310) target = $region28
        $region27: #{discriminator_forward.1} parent=11 // pred_region
          _
        $region28: #{discriminator_forward.1} parent=11 // pred_fallthru
          _
        // Predicated region
        $region29: #{discriminator_forward.1} parent=11 // pred_check
          %p313 = pneg %p155
        $region30: #{discriminator_forward.1} parent=11 // pred_check_branch
          %315 = sbr.rel (%p313) target = $region32
        $region31: #{discriminator_forward.1} parent=11 // pred_region
          _
        $region32: #{discriminator_forward.1} parent=11 // pred_fallthru
          _
        // Predicated region
        $region33: #{discriminator_forward.1} parent=11 // pred_check
          %p316 = pneg %p176
        $region34: #{discriminator_forward.1} parent=11 // pred_check_branch
          %318 = sbr.rel (%p316) target = $region36
        $region35: #{discriminator_forward.1} parent=11 // pred_region
          _
        $region36: #{discriminator_forward.1} parent=11 // pred_fallthru
          _
        // Predicated region
        $region37: #{discriminator_forward.1} parent=11 // pred_check
          %p319 = pneg %p197
        $region38: #{discriminator_forward.1} parent=11 // pred_check_branch
          %321 = sbr.rel (%p319) target = $region40
        $region39: #{discriminator_forward.1} parent=11 // pred_region
          _
        $region40: #{discriminator_forward.1} parent=11 // pred_fallthru
          _
        // Predicated region
        $region41: #{discriminator_forward.1} parent=11 // pred_check
          %p322 = pneg %p218
        $region42: #{discriminator_forward.1} parent=11 // pred_check_branch
          %324 = sbr.rel (%p322) target = $region44
        $region43: #{discriminator_forward.1} parent=11 // pred_region
          _
        $region44: #{discriminator_forward.1} parent=11 // pred_fallthru
          _
        // Predicated region
        $region45: #{discriminator_forward.1} parent=11 // pred_check
          %p325 = pneg %p239
        $region46: #{discriminator_forward.1} parent=11 // pred_check_branch
          %327 = sbr.rel (%p325) target = $region48
        $region47: #{discriminator_forward.1} parent=11 // pred_region
          _
        $region48: #{discriminator_forward.1} parent=11 // pred_fallthru
          _
        // Predicated region
        $region49: #{discriminator_forward.1} parent=11 // pred_check
          %p328 = pneg %p260
        $region50: #{discriminator_forward.1} parent=11 // pred_check_branch
          %330 = sbr.rel (%p328) target = $region52
        $region51: #{discriminator_forward.1} parent=11 // pred_region
          _
        $region52: #{discriminator_forward.1} parent=11 // pred_fallthru
          _
      $region12: #{discriminator_forward.1} parent=5 // pred_fallthru
        _
      %p331 = scmp.lt.s32.totalorder %s24, 2
      // Predicated region
      $region53: #{discriminator_forward.1} parent=5 // pred_check
        %p332 = pneg %p331
      $region54: #{discriminator_forward.1} parent=5 // pred_check_branch
        %334 = sbr.rel (%p332) target = $region56
      $region55: #{discriminator_forward.1} parent=5 // pred_region
        // Predicated region
        $region57: #{discriminator_forward.1} parent=55 // pred_check
          %p335 = pneg %p44
        $region58: #{discriminator_forward.1} parent=55 // pred_check_branch
          %337 = sbr.rel (%p335) target = $region60
        $region59: #{discriminator_forward.1} parent=55 // pred_region
          %s338 = smul.u32 16, %s24
          %p339 = scmp.lt.s32.totalorder %s338, 31
          %s340 = scalar_select %p339, %s338, 31
          %s341 = smul.addr %s340, 8
          %s342 = scalar_lea.vmem %s0, %s341
          %s343 = smul.u32 16, %s24
        $region60: #{discriminator_forward.1} parent=55 // pred_fallthru
          _
      $region56: #{discriminator_forward.1} parent=5 // pred_fallthru
        _
      %p344 = scmp.le.s32.totalorder 1, %s24
      %p345 = scmp.lt.s32.totalorder %s24, 3
      %p346 = pnand %p344, %p345
      %p347 = pneg %p346
      // Predicated region
      $region61: #{discriminator_forward.1} parent=5 // pred_check
        _
      $region62: #{discriminator_forward.1} parent=5 // pred_check_branch
        %349 = sbr.rel (%p346) target = $region64
      $region63: #{discriminator_forward.1} parent=5 // pred_region
        %s350 = ssub.s32 %s24, 1
        %s351 = smul.u32 16, %s29
        %p352 = scmp.lt.s32.totalorder %s351, 31
        %s353 = scalar_select %p352, %s351, 31
        %s354 = smul.addr %s353, 8
        %s355 = scalar_lea.vmem %s0, %s354
        %p356 = pneg %p50
        %p357 = pneg %p47
        %p358 = pneg %p71
        %p359 = pneg %p68
        %p360 = pneg %p92
        %p361 = pneg %p89
        %p362 = pneg %p113
        %p363 = pneg %p110
        %p364 = pneg %p134
        %p365 = pneg %p131
        %p366 = pneg %p155
        %p367 = pneg %p152
        %p368 = pneg %p176
        %p369 = pneg %p173
        %p370 = pneg %p197
        %p371 = pneg %p194
        %p372 = pneg %p218
        %p373 = pneg %p215
        %p374 = pneg %p239
        %p375 = pneg %p236
        %p376 = pneg %p260
        %p377 = pneg %p257
        %p378 = pneg %p286
        %p379 = pneg %p283
        %s380 = sand.u32 %s273, 1
        %s381 = scalar_lea.sflag [#allocation5], %s380
        %s382 = sand.u32 %s273, 1
        %s383 = scalar_lea.vmem [#allocation4], %s382
        %s384 = smul.u32 16, %s29
        %p385 = scmp.lt.s32.totalorder %s384, 31
        %s386 = scalar_select %p385, %s384, 31
        %s387 = smul.addr %s386, 8
        %s388 = scalar_lea.vmem %s0, %s387
        %s389 = smul.u32 16, %s29
        %v391 = vld [vmem:[%s388] sm:$0xff]
        %v392 = vld [vmem:[%s388 + $0x8] sm:$0xff]
        %v393 = vld [vmem:[%s388 + $0x10] sm:$0xff]
        %v394 = vld [vmem:[%s388 + $0x18] sm:$0xff]
        %v395 = vld [vmem:[%s388 + $0x20] sm:$0xff]
        %v396 = vld [vmem:[%s388 + $0x28] sm:$0xff]
        %v397 = vld [vmem:[%s388 + $0x30] sm:$0xff]
        %v398 = vld [vmem:[%s388 + $0x38] sm:$0xff]
        %v399 = vld [vmem:[%s388 + $0x40] sm:$0xff]
        %v400 = vld [vmem:[%s388 + $0x48] sm:$0xff]
        %v401 = vld [vmem:[%s388 + $0x50] sm:$0xff]
        %v402 = vld [vmem:[%s388 + $0x58] sm:$0xff]
        %v403 = vld [vmem:[%s388 + $0x60] sm:$0xff]
        %v404 = vld [vmem:[%s388 + $0x68] sm:$0xff]
        %v405 = vld [vmem:[%s388 + $0x70] sm:$0xff]
        %v406 = vld [vmem:[%s388 + $0x78] sm:$0xff]
        %v407 = vpack.c.bf16 %v392, %v391
        %v408 = vpack.c.bf16 %v394, %v393
        %v409 = vpack.c.bf16 %v396, %v395
        %v410 = vpack.c.bf16 %v398, %v397
        %v411 = vpack.c.bf16 %v400, %v399
        %v412 = vpack.c.bf16 %v402, %v401
        %v413 = vpack.c.bf16 %v404, %v403
        %v414 = vpack.c.bf16 %v406, %v405
        %415 = vxpose.xlu0.c.b16.start [1/8] %v407, 128
        %416 = vxpose.xlu0.c.b16.cont [2/8] %v408, 128
        %417 = vxpose.xlu0.c.b16.cont [3/8] %v409, 128
        %418 = vxpose.xlu0.c.b16.cont [4/8] %v410, 128
        %419 = vxpose.xlu0.c.b16.cont [5/8] %v411, 128
        %420 = vxpose.xlu0.c.b16.cont [6/8] %v412, 128
        %421 = vxpose.xlu0.c.b16.cont [7/8] %v413, 128
        %422 = vxpose.xlu0.c.b16.end [8/8] %v414, 128
        %v423 = vpop.trf.xlu0
        %v424 = vpop.trf.xlu0
        %v425 = vpop.trf.xlu0
        %v426 = vpop.trf.xlu0
        %v427 = vpop.trf.xlu0
        %v428 = vpop.trf.xlu0
        %v429 = vpop.trf.xlu0
        %v430 = vpop.trf.xlu0
        %v431 = vld [vmem:[%s1] sm:$0xf]
        %v432 = vld [vmem:[%s1 + $0x4] sm:$0xf]
        %v433 = vld [vmem:[%s1 + $0x8] sm:$0xf]
        %v434 = vld [vmem:[%s1 + $0xc] sm:$0xf]
        %v435 = vld [vmem:[%s2] sm:$0xff]
        %v436 = vld [vmem:[%s2 + $0x8] sm:$0xff]
        %v437 = vld [vmem:[%s2 + $0x10] sm:$0xff]
        %v438 = vld [vmem:[%s2 + $0x18] sm:$0xff]
        %440 = vset.pattern.permute.xlu0 0
        %441 = vperm.xlu0 %440, %v435
        %v442 = vpop.permute.xlu0 %441
        %445 = vset.pattern.permute.xlu0 0
        %446 = vperm.xlu0 %445, %v436
        %v447 = vpop.permute.xlu0 %446
        %450 = vset.pattern.permute.xlu0 0
        %451 = vperm.xlu0 %450, %v437
        %v452 = vpop.permute.xlu0 %451
        %455 = vset.pattern.permute.xlu0 0
        %456 = vperm.xlu0 %455, %v438
        %v457 = vpop.permute.xlu0 %456
        %v463 = vunpack.c.l.b16 %v431
        %v464 = vunpack.c.l.b16 %v432
        %v465 = vunpack.c.l.b16 %v433
        %v466 = vunpack.c.l.b16 %v434
        %v467 = vpack.c.b16 %v464, %v463
        %v468 = vpack.c.b16 %v466, %v465
        %vm469 = vcmask 261120
        %v471 = vsel %vm469, %v467, 0
        %v474 = vsel %vm469, %v468, 0
        %476 = vmatpush.bf16.msra.mxu0 0
        %477 = vmatpush.bf16.msra.mxu0 0
        %478 = vmatpush.bf16.msra.mxu0 0
        %479 = vmatpush.bf16.msra.mxu0 0
        %480 = vmatpush.bf16.msra.mxu0 0
        %481 = vmatpush.bf16.msra.mxu0 0
        %482 = vmatpush.bf16.msra.mxu0 %v424
        %483 = vmatpush.bf16.msra.mxu0 %v423
        %484 = vmatmul.bf16.gmra.mxu0 %v471
        %v485 = vpop.f32.mrf.mxu0
        %v486 = vadd.f32 %v442, %v485
        %v487 = vpop.f32.mrf.mxu0
        %v488 = vadd.f32 %v447, %v487
        %489 = vmatmul.bf16.gmra.mxu0 %v474
        %v490 = vpop.f32.mrf.mxu0
        %v491 = vadd.f32 %v452, %v490
        %v492 = vpop.f32.mrf.mxu0
        %v493 = vadd.f32 %v457, %v492
        %494 = vdwg.mxu0
        %v495 = vtanh.pop %v486
        %v496 = vtanh.pop %v488
        %v497 = vtanh.pop %v491
        %v498 = vtanh.pop %v493
        %v499 = vld [vmem:[%s3] sm:$0xf]
        %v500 = vld [vmem:[%s3 + $0x4] sm:$0xf]
        %v501 = vld [vmem:[%s3 + $0x8] sm:$0xf]
        %v502 = vld [vmem:[%s3 + $0xc] sm:$0xf]
        %v503 = vpack.c.bf16 %v496, %v495
        %v504 = vpack.c.bf16 %v498, %v497
        %v505 = vld [vmem:[%s4] sm:$0xff]
        %v506 = vld [vmem:[%s4 + $0x8] sm:$0xff]
        %v507 = vld [vmem:[%s4 + $0x10] sm:$0xff]
        %v508 = vld [vmem:[%s4 + $0x18] sm:$0xff]
        %510 = vset.pattern.permute.xlu0 0
        %511 = vperm.xlu0 %510, %v505
        %v512 = vpop.permute.xlu0 %511
        %515 = vset.pattern.permute.xlu0 0
        %516 = vperm.xlu0 %515, %v506
        %v517 = vpop.permute.xlu0 %516
        %520 = vset.pattern.permute.xlu0 0
        %521 = vperm.xlu0 %520, %v507
        %v522 = vpop.permute.xlu0 %521
        %525 = vset.pattern.permute.xlu0 0
        %526 = vperm.xlu0 %525, %v508
        %v527 = vpop.permute.xlu0 %526
        %v533 = vunpack.c.l.b16 %v499
        %v534 = vunpack.c.l.b16 %v500
        %v535 = vunpack.c.l.b16 %v501
        %v536 = vunpack.c.l.b16 %v502
        %v537 = vpack.c.b16 %v534, %v533
        %v538 = vpack.c.b16 %v536, %v535
        %v540 = vsel %vm469, %v537, 0
        %v543 = vsel %vm469, %v538, 0
        %545 = vmatpush.bf16.msra.mxu0 0
        %546 = vmatpush.bf16.msra.mxu0 0
        %547 = vmatpush.bf16.msra.mxu0 0
        %548 = vmatpush.bf16.msra.mxu0 0
        %549 = vmatpush.bf16.msra.mxu0 0
        %550 = vmatpush.bf16.msra.mxu0 0
        %551 = vmatpush.bf16.msra.mxu0 %v504
        %552 = vmatpush.bf16.msra.mxu0 %v503
        %553 = vmatmul.bf16.gmra.mxu0 %v540
        %v554 = vpop.f32.mrf.mxu0
        %v555 = vadd.f32 %v512, %v554
        %v556 = vpop.f32.mrf.mxu0
        %v557 = vadd.f32 %v517, %v556
        %558 = vmatmul.bf16.gmra.mxu0 %v543
        %v559 = vpop.f32.mrf.mxu0
        %v560 = vadd.f32 %v522, %v559
        %v561 = vpop.f32.mrf.mxu0
        %v562 = vadd.f32 %v527, %v561
        %563 = vdwg.mxu0
        %v564 = vtanh.pop %v555
        %v565 = vtanh.pop %v557
        %v566 = vtanh.pop %v560
        %v567 = vtanh.pop %v562
        %v568 = vld [vmem:[%s5] sm:$0xf]
        %v569 = vld [vmem:[%s5 + $0x4] sm:$0xf]
        %v570 = vld [vmem:[%s5 + $0x8] sm:$0xf]
        %v571 = vld [vmem:[%s5 + $0xc] sm:$0xf]
        %v572 = vpack.c.bf16 %v565, %v564
        %v573 = vpack.c.bf16 %v567, %v566
        %v574 = vld [vmem:[%s6] sm:$0xff]
        %v575 = vld [vmem:[%s6 + $0x8] sm:$0xff]
        %v576 = vld [vmem:[%s6 + $0x10] sm:$0xff]
        %v577 = vld [vmem:[%s6 + $0x18] sm:$0xff]
        %579 = vset.pattern.permute.xlu0 0
        %580 = vperm.xlu0 %579, %v574
        %v581 = vpop.permute.xlu0 %580
        %584 = vset.pattern.permute.xlu0 0
        %585 = vperm.xlu0 %584, %v575
        %v586 = vpop.permute.xlu0 %585
        %589 = vset.pattern.permute.xlu0 0
        %590 = vperm.xlu0 %589, %v576
        %v591 = vpop.permute.xlu0 %590
        %594 = vset.pattern.permute.xlu0 0
        %595 = vperm.xlu0 %594, %v577
        %v596 = vpop.permute.xlu0 %595
        %v602 = vunpack.c.l.b16 %v568
        %v603 = vunpack.c.l.b16 %v569
        %v604 = vunpack.c.l.b16 %v570
        %v605 = vunpack.c.l.b16 %v571
        %v606 = vpack.c.b16 %v603, %v602
        %v607 = vpack.c.b16 %v605, %v604
        %v609 = vsel %vm469, %v606, 0
        %v612 = vsel %vm469, %v607, 0
        %614 = vmatpush.bf16.msra.mxu0 0
        %615 = vmatpush.bf16.msra.mxu0 0
        %616 = vmatpush.bf16.msra.mxu0 0
        %617 = vmatpush.bf16.msra.mxu0 0
        %618 = vmatpush.bf16.msra.mxu0 0
        %619 = vmatpush.bf16.msra.mxu0 0
        %620 = vmatpush.bf16.msra.mxu0 %v573
        %621 = vmatpush.bf16.msra.mxu0 %v572
        %622 = vmatmul.bf16.gmra.mxu0 %v609
        %v623 = vpop.f32.mrf.mxu0
        %v624 = vadd.f32 %v581, %v623
        %v625 = vpop.f32.mrf.mxu0
        %v626 = vadd.f32 %v586, %v625
        %627 = vmatmul.bf16.gmra.mxu0 %v612
        %v628 = vpop.f32.mrf.mxu0
        %v629 = vadd.f32 %v591, %v628
        %v630 = vpop.f32.mrf.mxu0
        %v631 = vadd.f32 %v596, %v630
        %632 = vdwg.mxu0
        %v633 = vtanh.pop %v624
        %v634 = vtanh.pop %v626
        %v635 = vtanh.pop %v629
        %v636 = vtanh.pop %v631
        %v637 = vld [vmem:[%s7] sm:$0xff]
        %v638 = vld [vmem:[%s7 + $0x8] sm:$0xff]
        %v639 = vld [vmem:[%s7 + $0x10] sm:$0xff]
        %v640 = vld [vmem:[%s7 + $0x18] sm:$0xff]
        %642 = vset.pattern.permute.xlu0 0
        %643 = vperm.xlu0 %642, %v637
        %v644 = vpop.permute.xlu0 %643
        %647 = vset.pattern.permute.xlu0 0
        %648 = vperm.xlu0 %647, %v638
        %v649 = vpop.permute.xlu0 %648
        %652 = vset.pattern.permute.xlu0 0
        %653 = vperm.xlu0 %652, %v639
        %v654 = vpop.permute.xlu0 %653
        %657 = vset.pattern.permute.xlu0 0
        %658 = vperm.xlu0 %657, %v640
        %v659 = vpop.permute.xlu0 %658
        %v661 = vmul.f32 %v633, %v644
        %v662 = vmul.f32 %v634, %v649
        %v663 = vmul.f32 %v635, %v654
        %v664 = vmul.f32 %v636, %v659
        %v665 = vadd.f32 %v661, %v662
        %v666 = vadd.f32 %v665, %v663
        %v667 = vadd.f32 %v666, %v664
        %v668 = vrot.slane %v667, 4
        %v669 = vadd.f32 %v667, %v668
        %v670 = vrot.slane %v669, 2
        %v671 = vadd.f32 %v669, %v670
        %v672 = vrot.slane %v671, 1
        %v673 = vadd.f32 %v671, %v672
        %v674 = vld [vmem:[#allocation2] sm:$0x1]
        %676 = vset.pattern.permute.xlu0 0
        %677 = vperm.xlu0 %676, %v674
        %v678 = vpop.permute.xlu0 %677
        %v680 = vperm.slane %v678, 0
        %v681 = vadd.f32 %v673, %v680
        %v682 = vunpack.c.l.bf16 %v423
        %v683 = vunpack.c.h.bf16 %v423
        %v684 = vunpack.c.l.bf16 %v424
        %v685 = vunpack.c.h.bf16 %v424
        %v686 = vld [vmem:[%s9] sm:$0xff]
        %v687 = vld [vmem:[%s9 + $0x8] sm:$0xff]
        %v688 = vld [vmem:[%s9 + $0x10] sm:$0xff]
        %v689 = vld [vmem:[%s9 + $0x18] sm:$0xff]
        %691 = vset.pattern.permute.xlu0 0
        %692 = vperm.xlu0 %691, %v686
        %v693 = vpop.permute.xlu0 %692
        %696 = vset.pattern.permute.xlu0 0
        %697 = vperm.xlu0 %696, %v687
        %v698 = vpop.permute.xlu0 %697
        %701 = vset.pattern.permute.xlu0 0
        %702 = vperm.xlu0 %701, %v688
        %v703 = vpop.permute.xlu0 %702
        %706 = vset.pattern.permute.xlu0 0
        %707 = vperm.xlu0 %706, %v689
        %v708 = vpop.permute.xlu0 %707
        %v710 = vmul.f32 %v682, %v693
        %v711 = vmul.f32 %v683, %v698
        %v712 = vmul.f32 %v684, %v703
        %v713 = vmul.f32 %v685, %v708
        %v714 = vadd.f32 %v710, %v711
        %v715 = vadd.f32 %v714, %v712
        %v716 = vadd.f32 %v715, %v713
        %v717 = vrot.slane %v716, 4
        %v718 = vadd.f32 %v716, %v717
        %v719 = vrot.slane %v718, 2
        %v720 = vadd.f32 %v718, %v719
        %v721 = vrot.slane %v720, 1
        %v722 = vadd.f32 %v720, %v721
        %v723 = vld [vmem:[#allocation3] sm:$0x1]
        %725 = vset.pattern.permute.xlu0 0
        %726 = vperm.xlu0 %725, %v723
        %v727 = vpop.permute.xlu0 %726
        %v729 = vperm.slane %v727, 0
        %v730 = vadd.f32 %v722, %v729
        %v731 = vmax.f32 %v730, 0.0
        %v732 = vadd.f32 %v681, %v731
        %733 = vst [vmem:[%s383] sm:$0x1] %v732
        %s734 = sand.u32 %s273, 1
        %s735 = scalar_lea.sflag [#allocation5], %s734
        %s736 = sand.u32 %s273, 1
        %s737 = scalar_lea.vmem [#allocation4], %s736
        // Predicated region
        $region65: #{discriminator_forward.1} parent=63 // pred_check
          %p738 = pneg %p283
        $region66: #{discriminator_forward.1} parent=63 // pred_check_branch
          %740 = sbr.rel (%p738) target = $region68
        $region67: #{discriminator_forward.1} parent=63 // pred_region
          %742 = vsyncadd %s735, 0
          %s743 = scalar_lea.hbm %s11, %s29
          %s745 = sshll.u32 %s737, 4
          %s746 = int_to_ptr.vmem [resolvable:$true] %s745
          %s747 = sshll.u32 %s743, 4
          %s748 = int_to_ptr.hbm [resolvable:$true] %s747
          %750 = dma.vmem_to_hbm [thread:$0]  %s746, 16, %s748, %s735
        $region68: #{discriminator_forward.1} parent=63 // pred_fallthru
          _
      $region64: #{discriminator_forward.1} parent=5 // pred_fallthru
        _
      %p751 = scmp.le.s32.totalorder 2, %s24
      // Predicated region
      $region69: #{discriminator_forward.1} parent=5 // pred_check
        %p752 = pneg %p751
      $region70: #{discriminator_forward.1} parent=5 // pred_check_branch
        %754 = sbr.rel (%p752) target = $region72
      $region71: #{discriminator_forward.1} parent=5 // pred_region
        %s755 = ssub.s32 %s24, 2
        // Predicated region
        $region73: #{discriminator_forward.1} parent=71 // pred_check
          %p756 = pneg %p289
        $region74: #{discriminator_forward.1} parent=71 // pred_check_branch
          %758 = sbr.rel (%p756) target = $region76
        $region75: #{discriminator_forward.1} parent=71 // pred_region
          %s759 = sand.u32 %s274, 1
          %s760 = scalar_lea.sflag [#allocation5], %s759
          %s761 = sand.u32 %s274, 1
          %s762 = scalar_lea.vmem [#allocation4], %s761
          %764 = dma.done %s760, 16
        $region76: #{discriminator_forward.1} parent=71 // pred_fallthru
          _
      $region72: #{discriminator_forward.1} parent=5 // pred_fallthru
        _
    $region6: #{discriminator_forward.1} parent=1 // loop_footer
      %s28 = sadd.s32 1, %s24
    $region7: #{discriminator_forward.1} parent=1 // loop_footer_branch
      %23 = sbr.rel target = $region3
    $region8: #{discriminator_forward.1} parent=1 // loop_exit
      _
    %765 = vsyncpa [#allocation5], 1
    %s766 = scalar_lea.sflag [#allocation5], 1
    %767 = vsyncpa %s766, 1

</llo_original>
